<compile_context>
chip_gen: v6e
topology: v6e:2x2x1
jax: 0.10.0
libtpu: 0.0.40
codegen_flags: <defaults>
</compile_context>

<pallas_src>
import jax
import jax.numpy as jnp
from jax.experimental import pallas as pl
from jax.experimental.pallas import tpu as pltpu


def _round_up(x: int, m: int) -> int:
    return ((x + m - 1) // m) * m


def tmf_dec_kernel(u_ref, vt_ref, out_ref):
    """One grid step: (tm, d) @ (d, tn) -> (tm, tn) on the MXU, f32 accumulate."""
    out_ref[...] = jnp.dot(
        u_ref[...], vt_ref[...], preferred_element_type=jnp.float32
    ).astype(out_ref.dtype)


def tmf_dec(param_list, pre_t, *, tm=512, tn=1024, out_dtype=jnp.float32,
            min_out_elems_for_pallas=1 << 18):
    """Pallas implementation of TMF_Dec.forward(param_list, pre_t).

    param_list = [P0, P1, P2, U] with P0/P1/P2 of shape (N, d), U of shape
    (M, d). Returns U @ (P0 + P1*t + P2*t^2).T of shape (M, N).
    """
    p0, p1, p2, u = param_list
    N, d = p0.shape
    M = u.shape[0]

    # Polynomial temporal factor, evaluated once in the wrapper.
    t = jnp.float32(pre_t)
    v = (p0.astype(jnp.float32)
         + p1.astype(jnp.float32) * t
         + p2.astype(jnp.float32) * (t * t))              # (N, d)
    u = u.astype(jnp.float32)                             # (M, d)

    # Small-problem fallback: XLA's fused matmul beats kernel launch overhead.
    if M * N < min_out_elems_for_pallas:
        return jnp.dot(u, v.T,
                       preferred_element_type=jnp.float32).astype(out_dtype)

    vt = v.T                                              # (d, N): lane-dense, MXU-native RHS

    # Tile selection: tm multiple of 8 (sublane), tn multiple of 128 (lane).
    tm = min(tm, _round_up(M, 8))
    tn = min(tn, _round_up(N, 128))

    # v7x has 2 TensorCores: keep >= 2 blocks on the parallel M axis when the
    # problem is large enough for the split to matter (otherwise one TC idles).
    if pl.cdiv(M, tm) == 1 and M >= 16 and M * N >= (1 << 21):
        tm = _round_up(pl.cdiv(M, 2), 8)

    grid = (pl.cdiv(M, tm), pl.cdiv(N, tn))

    return pl.pallas_call(
        tmf_dec_kernel,
        out_shape=jax.ShapeDtypeStruct((M, N), out_dtype),
        grid_spec=pltpu.PrefetchScalarGridSpec(
            num_scalar_prefetch=0,
            grid=grid,
            in_specs=[
                pl.BlockSpec((tm, d), lambda i, j: (i, 0)),   # U row tile
                pl.BlockSpec((d, tn), lambda i, j: (0, j)),   # V.T column tile
            ],
            out_specs=pl.BlockSpec((tm, tn), lambda i, j: (i, j)),
        ),
        compiler_params=pltpu.CompilerParams(
            dimension_semantics=("parallel", "parallel"),
        ),
        cost_estimate=pl.CostEstimate(
            flops=2 * M * N * d,
            transcendentals=0,
            bytes_accessed=4 * (M * N + M * d + N * d),
        ),
    )(u, vt)


if __name__ == "__main__":
    key = jax.random.PRNGKey(0)
    k0, k1, k2, k3 = jax.random.split(key, 4)

    # Small, deliberately non-tile-aligned shapes: N nodes (V side),
    # M nodes (U side), latent dim d. pre_t is e.g. win_size + 1.
    N, d, M = 160, 8, 96
    p0 = jax.random.normal(k0, (N, d), dtype=jnp.float32)
    p1 = jax.random.normal(k1, (N, d), dtype=jnp.float32) * 0.1
    p2 = jax.random.normal(k2, (N, d), dtype=jnp.float32) * 0.01
    u = jax.random.normal(k3, (M, d), dtype=jnp.float32)
    pre_t = 9.0

    # Pure-JAX reference of the PyTorch forward.
    v_ref = p0 + p1 * pre_t + p2 * pre_t * pre_t
    ref = u @ v_ref.T

    # 1) Default dispatch: this size takes the small-problem XLA fallback.
    out_fb = jax.block_until_ready(tmf_dec([p0, p1, p2, u], pre_t))
    assert out_fb.shape == (M, N)
    assert jnp.allclose(out_fb, ref, atol=1e-3, rtol=1e-3), "fallback mismatch"

    # 2) Force the Pallas path (also exercises the masked ragged-boundary
    #    store path: the single 256-wide column block overhangs N=160).
    out_pl = jax.block_until_ready(
        tmf_dec([p0, p1, p2, u], pre_t, min_out_elems_for_pallas=0))
    assert out_pl.shape == (M, N)
    assert jnp.allclose(out_pl, ref, atol=1e-3, rtol=1e-3), "pallas mismatch"

    # 3) Multi-block grid with ragged boundaries on both axes.
    N2, M2 = 1300, 264
    kk = jax.random.split(jax.random.PRNGKey(1), 4)
    q0 = jax.random.normal(kk[0], (N2, d), dtype=jnp.float32)
    q1 = jax.random.normal(kk[1], (N2, d), dtype=jnp.float32) * 0.1
    q2 = jax.random.normal(kk[2], (N2, d), dtype=jnp.float32) * 0.01
    u2 = jax.random.normal(kk[3], (M2, d), dtype=jnp.float32)
    out2 = jax.block_until_ready(
        tmf_dec([q0, q1, q2, u2], pre_t, tm=128, tn=256,
                min_out_elems_for_pallas=0))
    v2_ref = q0 + q1 * pre_t + q2 * pre_t * pre_t
    ref2 = u2 @ v2_ref.T
    assert out2.shape == (M2, N2)
    assert jnp.allclose(out2, ref2, atol=1e-3, rtol=1e-3), "ragged-grid mismatch"

    print("KERNEL_OK")
</pallas_src>

<mosaic_0001>
module attributes {stable_mosaic.version = 11 : i64} {
  func.func @tmf_dec_kernel(%arg0: i32, %arg1: i32, %arg2: memref<96x8xf32, #tpu.memory_space<vmem>>, %arg3: memref<8x256xf32, #tpu.memory_space<vmem>>, %arg4: memref<96x256xf32, #tpu.memory_space<vmem>>) attributes {dimension_semantics = [#tpu.dimension_semantics<parallel>, #tpu.dimension_semantics<parallel>], iteration_bounds = array<i64: 1, 1>, scalar_prefetch = 0 : i64, scratch_operands = 0 : i64, tpu.core_type = #tpu.core_type<tc>, window_params = [{transform_indices = @transform_0, window_bounds = array<i64: 96, 8>}, {transform_indices = @transform_1, window_bounds = array<i64: 8, 256>}, {transform_indices = @transform_2, window_bounds = array<i64: 96, 256>}]} {
    %c0 = arith.constant 0 : index
    %c0_0 = arith.constant 0 : index
    %0 = vector.load %arg2[%c0, %c0_0] : memref<96x8xf32, #tpu.memory_space<vmem>>, vector<96x8xf32>
    %c0_1 = arith.constant 0 : index
    %c0_2 = arith.constant 0 : index
    %1 = vector.load %arg3[%c0_1, %c0_2] : memref<8x256xf32, #tpu.memory_space<vmem>>, vector<8x256xf32>
    %cst = arith.constant dense<0.000000e+00> : vector<96x256xf32>
    %2 = tpu.matmul %0, %1, %cst {dimension_numbers = #tpu.dot_dimension_numbers<[1], [0], [0], [1], [0, 0, 1, 1], [], []>} : vector<96x8xf32>, vector<8x256xf32>, vector<96x256xf32> -> vector<96x256xf32>
    %c0_3 = arith.constant 0 : index
    %c0_4 = arith.constant 0 : index
    %3 = vector.load %arg4[%c0_3, %c0_4] : memref<96x256xf32, #tpu.memory_space<vmem>>, vector<96x256xf32>
    tpu.vector_store %arg4[%c0_3, %c0_4], %2 {strides = array<i32>} : memref<96x256xf32, #tpu.memory_space<vmem>>, vector<96x256xf32>,
    return
  }
  func.func @transform_0(%arg0: i32, %arg1: i32) -> (i32, i32) {
    %c0_i32 = arith.constant 0 : i32
    %c0_i32_0 = arith.constant 0 : i32
    return %arg0, %c0_i32 : i32, i32
  }
  func.func @transform_1(%arg0: i32, %arg1: i32) -> (i32, i32) {
    %c0_i32 = arith.constant 0 : i32
    %c0_i32_0 = arith.constant 0 : i32
    return %c0_i32, %arg1 : i32, i32
  }
  func.func @transform_2(%arg0: i32, %arg1: i32) -> (i32, i32) {
    %c0_i32 = arith.constant 0 : i32
    return %arg0, %arg1 : i32, i32
  }
}

</mosaic_0001>

<llo_original>
// kernel: tpu_custom_call.1
$region0: #{tpu_custom_call.1}
  #allocation0 [shape = 'u32[]', space=smem, size = 0x4, offset = 0x4, fixed_abs, tag = 'smem constant byte address 0x4 - core index']
  #allocation1 [shape = 'u32[144,128]{1,0:T(1,128)}', space=vmem, size = 0x12000, scoped, tag = 'internal scratch']
  %s0 = inlined_call_operand.vmem [shape: f32[96,8], index: 0, kind: input, shape index: {}]
  %s1 = inlined_call_operand.vmem [shape: f32[8,160], index: 1, kind: input, shape index: {}]
  %s2 = inlined_call_operand.vmem [shape: f32[96,160], index: 2, kind: output, shape index: {}]
  %s3 = sld [smem:[#allocation0]]
  $region18: #{tpu_custom_call.1} parent=0
    _
  %s5 = ssub.s32 1, %s3
  %s6 = scalar_select 0, %s5, %s3
  // Predicated region
  $region2: #{tpu_custom_call.1} parent=0 // pred_check
    _
  $region3: #{tpu_custom_call.1} parent=0 // pred_check_branch
    %8 = sbr.rel (0) target = $region5
  $region4: #{tpu_custom_call.1} parent=0 // pred_region
    _
  $region5: #{tpu_custom_call.1} parent=0 // pred_fallthru
    _
  // Predicated region
  $region6: #{tpu_custom_call.1} parent=0 // pred_check
    _
  $region7: #{tpu_custom_call.1} parent=0 // pred_check_branch
    %10 = sbr.rel (0) target = $region9
  $region8: #{tpu_custom_call.1} parent=0 // pred_region
    _
  $region9: #{tpu_custom_call.1} parent=0 // pred_fallthru
    _
  %v11 = vld [vmem:[%s0] sm:$0xff]
  %v12 = vld [vmem:[%s0 + $0x8] sm:$0xff]
  %v13 = vld [vmem:[%s0 + $0x10] sm:$0xff]
  %v14 = vld [vmem:[%s0 + $0x18] sm:$0xff]
  %v15 = vld [vmem:[%s0 + $0x20] sm:$0xff]
  %v16 = vld [vmem:[%s0 + $0x28] sm:$0xff]
  %v17 = vld [vmem:[%s0 + $0x30] sm:$0xff]
  %v18 = vld [vmem:[%s0 + $0x38] sm:$0xff]
  %v19 = vld [vmem:[%s0 + $0x40] sm:$0xff]
  %v20 = vld [vmem:[%s0 + $0x48] sm:$0xff]
  %v21 = vld [vmem:[%s0 + $0x50] sm:$0xff]
  %v22 = vld [vmem:[%s0 + $0x58] sm:$0xff]
  %v23 = vld [vmem:[%s1] sm:$0xff]
  %v24 = vld [vmem:[%s1 + $0x8] sm:$0xff]
  %vm25 = vcmask 64512
  %v27 = vsel %vm25, %v11, 0
  %v30 = vsel %vm25, %v12, 0
  %v33 = vsel %vm25, %v13, 0
  %v36 = vsel %vm25, %v14, 0
  %v39 = vsel %vm25, %v15, 0
  %v42 = vsel %vm25, %v16, 0
  %v45 = vsel %vm25, %v17, 0
  %v48 = vsel %vm25, %v18, 0
  %v51 = vsel %vm25, %v19, 0
  %v54 = vsel %vm25, %v20, 0
  %v57 = vsel %vm25, %v21, 0
  %v60 = vsel %vm25, %v22, 0
  %62 = vmatprep.subr.mxu0 0.0
  %63 = vmatpush1.msra.mxu0 0.0
  %64 = vmatprep.subr.mxu0 0.0
  %65 = vmatpush1.msra.mxu0 0.0
  %66 = vmatprep.subr.mxu0 0.0
  %67 = vmatpush1.msra.mxu0 0.0
  %68 = vmatprep.subr.mxu0 0.0
  %69 = vmatpush1.msra.mxu0 0.0
  %70 = vmatprep.subr.mxu0 0.0
  %71 = vmatpush1.msra.mxu0 0.0
  %72 = vmatprep.subr.mxu0 0.0
  %73 = vmatpush1.msra.mxu0 0.0
  %74 = vmatprep.subr.mxu0 0.0
  %75 = vmatpush1.msra.mxu0 0.0
  %76 = vmatprep.subr.mxu0 0.0
  %77 = vmatpush1.msra.mxu0 0.0
  %78 = vmatprep.subr.mxu0 0.0
  %79 = vmatpush1.msra.mxu0 0.0
  %80 = vmatprep.subr.mxu0 0.0
  %81 = vmatpush1.msra.mxu0 0.0
  %82 = vmatprep.subr.mxu0 0.0
  %83 = vmatpush1.msra.mxu0 0.0
  %84 = vmatprep.subr.mxu0 0.0
  %85 = vmatpush1.msra.mxu0 0.0
  %86 = vmatprep.subr.mxu0 0.0
  %87 = vmatpush1.msra.mxu0 0.0
  %88 = vmatprep.subr.mxu0 0.0
  %89 = vmatpush1.msra.mxu0 0.0
  %90 = vmatprep.subr.mxu0 0.0
  %91 = vmatpush1.msra.mxu0 0.0
  %92 = vmatprep.subr.mxu0 %v24
  %93 = vmatpush1.msra.mxu0 %v23
  %94 = vmatprep.subr.mxu0 0.0
  %95 = vmatpush2.msra.mxu0 0.0
  %96 = vmatprep.subr.mxu0 0.0
  %97 = vmatpush2.msra.mxu0 0.0
  %98 = vmatprep.subr.mxu0 0.0
  %99 = vmatpush2.msra.mxu0 0.0
  %100 = vmatprep.subr.mxu0 0.0
  %101 = vmatpush2.msra.mxu0 0.0
  %102 = vmatprep.subr.mxu0 0.0
  %103 = vmatpush2.msra.mxu0 0.0
  %104 = vmatprep.subr.mxu0 0.0
  %105 = vmatpush2.msra.mxu0 0.0
  %106 = vmatprep.subr.mxu0 0.0
  %107 = vmatpush2.msra.mxu0 0.0
  %108 = vmatprep.subr.mxu0 0.0
  %109 = vmatpush2.msra.mxu0 0.0
  %110 = vmatprep.subr.mxu0 0.0
  %111 = vmatpush2.msra.mxu0 0.0
  %112 = vmatprep.subr.mxu0 0.0
  %113 = vmatpush2.msra.mxu0 0.0
  %114 = vmatprep.subr.mxu0 0.0
  %115 = vmatpush2.msra.mxu0 0.0
  %116 = vmatprep.subr.mxu0 0.0
  %117 = vmatpush2.msra.mxu0 0.0
  %118 = vmatprep.subr.mxu0 0.0
  %119 = vmatpush2.msra.mxu0 0.0
  %120 = vmatprep.subr.mxu0 0.0
  %121 = vmatpush2.msra.mxu0 0.0
  %122 = vmatprep.subr.mxu0 0.0
  %123 = vmatpush2.msra.mxu0 0.0
  %124 = vmatprep.subr.mxu0 0.0
  %125 = vmatpush2.msra.mxu0 0.0
  %126 = vmatprep.mubr.f32.mxu0 0.0
  %127 = vmatmul.mubr.f32.gmra.mxu0 %v27
  %v128 = vpop.f32.mrf.mxu0
  %v129 = vadd.f32 0.0, %v128
  %v130 = vpop.f32.mrf.mxu0
  %v131 = vadd.f32 0.0, %v130
  %132 = vmatprep.mubr.f32.mxu0 0.0
  %133 = vmatmul.mubr.f32.gmra.mxu0 %v30
  %v134 = vpop.f32.mrf.mxu0
  %v135 = vadd.f32 0.0, %v134
  %v136 = vpop.f32.mrf.mxu0
  %v137 = vadd.f32 0.0, %v136
  %138 = vmatprep.mubr.f32.mxu0 0.0
  %139 = vmatmul.mubr.f32.gmra.mxu0 %v33
  %v140 = vpop.f32.mrf.mxu0
  %v141 = vadd.f32 0.0, %v140
  %v142 = vpop.f32.mrf.mxu0
  %v143 = vadd.f32 0.0, %v142
  %144 = vmatprep.mubr.f32.mxu0 0.0
  %145 = vmatmul.mubr.f32.gmra.mxu0 %v36
  %v146 = vpop.f32.mrf.mxu0
  %v147 = vadd.f32 0.0, %v146
  %v148 = vpop.f32.mrf.mxu0
  %v149 = vadd.f32 0.0, %v148
  %150 = vmatprep.mubr.f32.mxu0 0.0
  %151 = vmatmul.mubr.f32.gmra.mxu0 %v39
  %v152 = vpop.f32.mrf.mxu0
  %v153 = vadd.f32 0.0, %v152
  %v154 = vpop.f32.mrf.mxu0
  %v155 = vadd.f32 0.0, %v154
  %156 = vmatprep.mubr.f32.mxu0 0.0
  %157 = vmatmul.mubr.f32.gmra.mxu0 %v42
  %v158 = vpop.f32.mrf.mxu0
  %v159 = vadd.f32 0.0, %v158
  %v160 = vpop.f32.mrf.mxu0
  %v161 = vadd.f32 0.0, %v160
  %162 = vmatprep.mubr.f32.mxu0 0.0
  %163 = vmatmul.mubr.f32.gmra.mxu0 %v45
  %v164 = vpop.f32.mrf.mxu0
  %v165 = vadd.f32 0.0, %v164
  %v166 = vpop.f32.mrf.mxu0
  %v167 = vadd.f32 0.0, %v166
  %168 = vmatprep.mubr.f32.mxu0 0.0
  %169 = vmatmul.mubr.f32.gmra.mxu0 %v48
  %v170 = vpop.f32.mrf.mxu0
  %v171 = vadd.f32 0.0, %v170
  %v172 = vpop.f32.mrf.mxu0
  %v173 = vadd.f32 0.0, %v172
  %174 = vmatprep.mubr.f32.mxu0 0.0
  %175 = vmatmul.mubr.f32.gmra.mxu0 %v51
  %v176 = vpop.f32.mrf.mxu0
  %v177 = vadd.f32 0.0, %v176
  %v178 = vpop.f32.mrf.mxu0
  %v179 = vadd.f32 0.0, %v178
  %180 = vmatprep.mubr.f32.mxu0 0.0
  %181 = vmatmul.mubr.f32.gmra.mxu0 %v54
  %v182 = vpop.f32.mrf.mxu0
  %v183 = vadd.f32 0.0, %v182
  %v184 = vpop.f32.mrf.mxu0
  %v185 = vadd.f32 0.0, %v184
  %186 = vmatprep.mubr.f32.mxu0 0.0
  %187 = vmatmul.mubr.f32.gmra.mxu0 %v57
  %v188 = vpop.f32.mrf.mxu0
  %v189 = vadd.f32 0.0, %v188
  %v190 = vpop.f32.mrf.mxu0
  %v191 = vadd.f32 0.0, %v190
  %192 = vmatprep.mubr.f32.mxu0 0.0
  %193 = vmatmul.mubr.f32.gmra.mxu0 %v60
  %v194 = vpop.f32.mrf.mxu0
  %v195 = vadd.f32 0.0, %v194
  %v196 = vpop.f32.mrf.mxu0
  %v197 = vadd.f32 0.0, %v196
  %198 = vdwg.mxu0
  %199 = vst [vmem:[%s2] sm:$0xff] %v129
  %200 = vst [vmem:[%s2 + $0x8] sm:$0xff] %v131
  %201 = vst [vmem:[%s2 + $0x10] sm:$0xff] %v135
  %202 = vst [vmem:[%s2 + $0x18] sm:$0xff] %v137
  %203 = vst [vmem:[%s2 + $0x20] sm:$0xff] %v141
  %204 = vst [vmem:[%s2 + $0x28] sm:$0xff] %v143
  %205 = vst [vmem:[%s2 + $0x30] sm:$0xff] %v147
  %206 = vst [vmem:[%s2 + $0x38] sm:$0xff] %v149
  %207 = vst [vmem:[%s2 + $0x40] sm:$0xff] %v153
  %208 = vst [vmem:[%s2 + $0x48] sm:$0xff] %v155
  %209 = vst [vmem:[%s2 + $0x50] sm:$0xff] %v159
  %210 = vst [vmem:[%s2 + $0x58] sm:$0xff] %v161
  %211 = vst [vmem:[%s2 + $0x60] sm:$0xff] %v165
  %212 = vst [vmem:[%s2 + $0x68] sm:$0xff] %v167
  %213 = vst [vmem:[%s2 + $0x70] sm:$0xff] %v171
  %214 = vst [vmem:[%s2 + $0x78] sm:$0xff] %v173
  %215 = vst [vmem:[%s2 + $0x80] sm:$0xff] %v177
  %216 = vst [vmem:[%s2 + $0x88] sm:$0xff] %v179
  %217 = vst [vmem:[%s2 + $0x90] sm:$0xff] %v183
  %218 = vst [vmem:[%s2 + $0x98] sm:$0xff] %v185
  %219 = vst [vmem:[%s2 + $0xa0] sm:$0xff] %v189
  %220 = vst [vmem:[%s2 + $0xa8] sm:$0xff] %v191
  %221 = vst [vmem:[%s2 + $0xb0] sm:$0xff] %v195
  %222 = vst [vmem:[%s2 + $0xb8] sm:$0xff] %v197
  // Predicated region
  $region10: #{tpu_custom_call.1} parent=0 // pred_check
    _
  $region11: #{tpu_custom_call.1} parent=0 // pred_check_branch
    %224 = sbr.rel (0) target = $region13
  $region12: #{tpu_custom_call.1} parent=0 // pred_region
    _
  $region13: #{tpu_custom_call.1} parent=0 // pred_fallthru
    _
  // Predicated region
  $region14: #{tpu_custom_call.1} parent=0 // pred_check
    _
  $region15: #{tpu_custom_call.1} parent=0 // pred_check_branch
    %226 = sbr.rel (0) target = $region17
  $region16: #{tpu_custom_call.1} parent=0 // pred_region
    _
  $region17: #{tpu_custom_call.1} parent=0 // pred_fallthru
    _

</llo_original>
